<compile_context>
chip_gen: v7x
topology: tpu7x:2x2x1
jax: 0.10.0
libtpu: 0.0.40
codegen_flags: <defaults>
</compile_context>

<pallas_src>
import functools

import jax
import jax.numpy as jnp
from jax.experimental import pallas as pl
from jax.experimental.pallas import tpu as pltpu


_NEG_INF = -1e30  # padded-class bias: exp() underflows to exactly 0, no inf*0 NaNs


def _round_up(x, m):
    return (x + m - 1) // m * m


def _vmem_cap_bytes():
    """Generation-aware VMEM budget: ~3/4 of physical (96 MiB v5e/v6e, 48 MiB v7x)."""
    try:
        phys = pltpu.get_tpu_info().vmem_capacity_bytes
    except Exception:
        phys = 64 * 1024 * 1024          # conservative fallback = v7x physical
    return int(phys) * 3 // 4


def _ets_kernel(scal_ref, x_ref, w_ref, b_ref, out_ref, *, num_classes):
    """One row tile: logits = x @ W + b (backbone), then ETS calibration.

    scal_ref : SMEM f32[4]             -> [temperature, w1, w2, w3]
    x_ref    : VMEM bf16[tile_n, F]
    w_ref    : VMEM bf16[F, C_pad]     (padded class columns are zero)
    b_ref    : VMEM f32[1, C_pad]      (padded class entries are -1e30)
    out_ref  : VMEM f32[tile_n, C_pad]
    """
    # Backbone (linear stand-in) -> logits.  bf16 MXU operands, f32 accumulate.
    logits = jnp.dot(x_ref[...], w_ref[...],
                     preferred_element_type=jnp.float32) + b_ref[...]

    inv_t = 1.0 / scal_ref[0]            # scalar reciprocal: divide -> multiply
    w1 = scal_ref[1]
    w2 = scal_ref[2]
    w3 = scal_ref[3]

    # Shared row max: max(logits / t) == max(logits) / t for t > 0, so a single
    # XLU cross-lane reduction serves both softmaxes.  Padded-class logits are
    # ~-1e30, never win the max, and their exp() terms are exactly 0.
    m = jnp.max(logits, axis=-1, keepdims=True)
    z = logits - m

    e_t = jnp.exp(z * inv_t)             # exp((logits - m) / t)
    e_1 = jnp.exp(z)                     # exp(logits - m)

    # Ensemble weights folded into the per-row [tile_n, 1] reciprocal columns:
    # removes two full-tile VPU multiplies per element.
    a_t = w1 * pl.reciprocal(jnp.sum(e_t, axis=-1, keepdims=True), approx=True)
    a_1 = w2 * pl.reciprocal(jnp.sum(e_1, axis=-1, keepdims=True), approx=True)

    p = a_t * e_t + a_1 * e_1 + w3 * (1.0 / num_classes)

    # TODO(synk): if production C stays << 128 (e.g. C=8), lane-pack several
    # rows' classes per 128-lane row with segmented max/sum reductions to stop
    # wasting ~94% of the exp/log EUP work on dead lanes.
    out_ref[...] = jnp.log(p)


def ets_forward(features, W, b, scalars, *, num_classes, tile_n=512,
                single_buffer_weights=False):
    """Pallas wrapper: bf16 matmul inputs, lane-padded classes, row-tiled grid."""
    N, F = features.shape
    C = W.shape[1]
    assert C == num_classes

    # Lane-dense output: pad the class axis to a multiple of 128 so stores are
    # full-width vst and MXU result lanes are not wasted.
    C_pad = _round_up(C, 128)

    # Row tiles: clamp for tiny N, then ensure the "parallel" row axis has at
    # least 2 grid steps whenever N allows so both v7x TensorCores get work
    # (one extra ~0.35 us grid step on single-core v5e/v6e -- negligible).
    tile_n = min(tile_n, _round_up(N, 8))
    if pl.cdiv(N, tile_n) < 2 and N > 8:
        tile_n = _round_up(pl.cdiv(N, 2), 8)
    grid_n = pl.cdiv(N, tile_n)

    # bf16 MXU operands (accumulation stays f32 in the kernel); bias stays f32.
    # No N padding: the last (partial) grid block reads unspecified tail rows
    # and its OOB writes are dropped -- tail rows never reach the output.
    x_b = features.astype(jnp.bfloat16)
    W_p = W
    b_p = b.reshape(1, C).astype(jnp.float32)
    if C_pad != C:
        W_p = jnp.pad(W, ((0, 0), (0, C_pad - C)))
        b_p = jnp.pad(b_p, ((0, 0), (0, C_pad - C)), constant_values=_NEG_INF)
    W_b = W_p.astype(jnp.bfloat16)

    kernel = functools.partial(_ets_kernel, num_classes=num_classes)

    # W/b have constant index maps; double-buffering them only doubles the
    # resident footprint for zero pipelining benefit.  Flip this on for v7x
    # (64 MiB VMEM) when F is large.
    w_mode = (dict(pipeline_mode=pl.Buffered(buffer_count=1))
              if single_buffer_weights else {})
    w_bufs = 1 if single_buffer_weights else 2

    # VMEM: double-buffered x/out tiles + resident W/b, capped generation-aware.
    # TODO(synk): if F grows large (>= 4K), add a K grid axis marked
    # "arbitrary" with an f32 VMEM accumulator instead of keeping the whole
    # (F, C_pad) weight resident (needed on v7x well before v5e/v6e).
    vmem_bytes = (2 * (2 * tile_n * F)             # bf16 x, double buffered
                  + 2 * (4 * tile_n * C_pad)       # f32 out, double buffered
                  + w_bufs * (2 * F * C_pad + 4 * C_pad))
    vmem_limit = int(min(max(2 * vmem_bytes, 8 * 1024 * 1024), _vmem_cap_bytes()))

    cost = pl.CostEstimate(
        flops=2 * N * F * C_pad + 8 * N * C_pad,
        transcendentals=3 * N * C_pad,             # 2x exp + 1x log / element
        bytes_accessed=2 * (N * F + F * C_pad) + 4 * (C_pad + N * C_pad),
    )

    out_padded = pl.pallas_call(
        kernel,
        out_shape=jax.ShapeDtypeStruct((N, C_pad), jnp.float32),
        grid=(grid_n,),
        in_specs=[
            pl.BlockSpec(memory_space=pltpu.MemorySpace.SMEM),     # scalars
            pl.BlockSpec((tile_n, F), lambda i: (i, 0)),           # feature tile
            pl.BlockSpec((F, C_pad), lambda i: (0, 0), **w_mode),  # resident W
            pl.BlockSpec((1, C_pad), lambda i: (0, 0), **w_mode),  # bias row
        ],
        out_specs=pl.BlockSpec((tile_n, C_pad), lambda i: (i, 0)),
        compiler_params=pltpu.CompilerParams(
            dimension_semantics=("parallel",),      # row axis shards across TCs
            vmem_limit_bytes=vmem_limit),
        cost_estimate=cost,
    )(scalars, x_b, W_b, b_p)

    # TODO(synk): emit bf16 output (halves store traffic / output buffers) if
    # downstream calibration metrics tolerate it; kept f32 for parity here.
    return out_padded[:, :C]


if __name__ == "__main__":
    key = jax.random.PRNGKey(0)
    k1, k2, k3 = jax.random.split(key, 3)

    N, F, C = 16, 32, 8           # nodes, feature dim, num_classes

    features = jax.random.normal(k1, (N, F), dtype=jnp.float32)
    W = jax.random.normal(k2, (F, C), dtype=jnp.float32) * 0.1
    b = jax.random.normal(k3, (1, C), dtype=jnp.float32) * 0.1

    # Parameters per ETS/TS __init__ shapes: temperature(1), weight1/2/3(1).
    # Deterministic, non-trivial values so every ensemble term is exercised.
    temperature = 1.5
    w1, w2, w3 = 0.6, 0.3, 0.1
    scalars = jnp.array([temperature, w1, w2, w3], dtype=jnp.float32)

    out = ets_forward(features, W, b, scalars, num_classes=C)
    out = jax.block_until_ready(out)

    # Pure-JAX reference of the PyTorch forward semantics, with the backbone
    # matmul at the same precision the kernel uses (bf16 operands, f32 acc).
    logits = jnp.dot(features.astype(jnp.bfloat16), W.astype(jnp.bfloat16),
                     preferred_element_type=jnp.float32) + b
    p_ref = (w1 * jax.nn.softmax(logits / temperature, axis=1)
             + w2 * jax.nn.softmax(logits, axis=1)
             + w3 * (1.0 / C))
    ref = jnp.log(p_ref)

    assert out.shape == (N, C)
    err = jnp.max(jnp.abs(out - ref))
    # approx=True reciprocal (EUP vrcp) slightly relaxes tolerance vs exact.
    assert jnp.allclose(out, ref, atol=2e-3, rtol=2e-3), f"max abs err {err}"

    print("KERNEL_OK")
</pallas_src>

<mosaic_0001>
module attributes {stable_mosaic.version = 11 : i64} {
  func.func @_ets_kernel(%arg0: i32, %arg1: memref<4xf32, #tpu.memory_space<smem>>, %arg2: memref<8x32xbf16, #tpu.memory_space<vmem>>, %arg3: memref<32x128xbf16, #tpu.memory_space<vmem>>, %arg4: memref<1x128xf32, #tpu.memory_space<vmem>>, %arg5: memref<8x128xf32, #tpu.memory_space<vmem>>) attributes {dimension_semantics = [#tpu.dimension_semantics<parallel>], iteration_bounds = array<i64: 2>, scalar_prefetch = 0 : i64, scratch_operands = 0 : i64, tpu.core_type = #tpu.core_type<tc>, window_params = [{transform_indices = @transform_0, window_bounds = array<i64: 4>}, {transform_indices = @transform_1, window_bounds = array<i64: 8, 32>}, {pipeline_mode = #tpu.pipeline_mode<synchronous>, transform_indices = @transform_2, window_bounds = array<i64: 32, 128>}, {pipeline_mode = #tpu.pipeline_mode<synchronous>, transform_indices = @transform_3, window_bounds = array<i64: 1, 128>}, {transform_indices = @transform_4, window_bounds = array<i64: 8, 128>}]} {
    %c0 = arith.constant 0 : index
    %c0_0 = arith.constant 0 : index
    %0 = vector.load %arg2[%c0, %c0_0] : memref<8x32xbf16, #tpu.memory_space<vmem>>, vector<8x32xbf16>
    %c0_1 = arith.constant 0 : index
    %c0_2 = arith.constant 0 : index
    %1 = vector.load %arg3[%c0_1, %c0_2] : memref<32x128xbf16, #tpu.memory_space<vmem>>, vector<32x128xbf16>
    %cst = arith.constant dense<0.000000e+00> : vector<8x128xf32>
    %2 = tpu.matmul %0, %1, %cst {dimension_numbers = #tpu.dot_dimension_numbers<[1], [0], [0], [1], [0, 0, 1, 1], [], []>} : vector<8x32xbf16>, vector<32x128xbf16>, vector<8x128xf32> -> vector<8x128xf32>
    %c0_3 = arith.constant 0 : index
    %c0_4 = arith.constant 0 : index
    %3 = vector.load %arg4[%c0_3, %c0_4] : memref<1x128xf32, #tpu.memory_space<vmem>>, vector<1x128xf32>
    %4 = vector.broadcast %3 : vector<1x128xf32> to vector<8x128xf32>
    %5 = arith.addf %2, %4 : vector<8x128xf32>
    %c0_5 = arith.constant 0 : index
    %6 = memref.load %arg1[%c0_5] : memref<4xf32, #tpu.memory_space<smem>>
    %cst_6 = arith.constant 1.000000e+00 : f32
    %7 = arith.divf %cst_6, %6 : f32
    %c1 = arith.constant 1 : index
    %8 = memref.load %arg1[%c1] : memref<4xf32, #tpu.memory_space<smem>>
    %c2 = arith.constant 2 : index
    %9 = memref.load %arg1[%c2] : memref<4xf32, #tpu.memory_space<smem>>
    %c3 = arith.constant 3 : index
    %10 = memref.load %arg1[%c3] : memref<4xf32, #tpu.memory_space<smem>>
    %cst_7 = arith.constant dense<0xFF800000> : vector<8xf32>
    %11 = vector.multi_reduction <maximumf>, %5, %cst_7 [1] : vector<8x128xf32> to vector<8xf32>
    %12 = vector.shape_cast %11 : vector<8xf32> to vector<8x1xf32>
    %13 = vector.broadcast %12 : vector<8x1xf32> to vector<8x128xf32>
    %14 = arith.subf %5, %13 : vector<8x128xf32>
    %15 = vector.broadcast %7 : f32 to vector<8x128xf32>
    %16 = arith.mulf %14, %15 : vector<8x128xf32>
    %17 = math.exp %16 : vector<8x128xf32>
    %18 = math.exp %14 : vector<8x128xf32>
    %cst_8 = arith.constant dense<0.000000e+00> : vector<8xf32>
    %19 = vector.multi_reduction <add>, %17, %cst_8 [1] : vector<8x128xf32> to vector<8xf32>
    %20 = vector.shape_cast %19 : vector<8xf32> to vector<8x1xf32>
    %21 = tpu.reciprocal %20 {approx = true} : vector<8x1xf32> -> vector<8x1xf32>
    %22 = vector.broadcast %8 : f32 to vector<8x1xf32>
    %23 = arith.mulf %22, %21 : vector<8x1xf32>
    %cst_9 = arith.constant dense<0.000000e+00> : vector<8xf32>
    %24 = vector.multi_reduction <add>, %18, %cst_9 [1] : vector<8x128xf32> to vector<8xf32>
    %25 = vector.shape_cast %24 : vector<8xf32> to vector<8x1xf32>
    %26 = tpu.reciprocal %25 {approx = true} : vector<8x1xf32> -> vector<8x1xf32>
    %27 = vector.broadcast %9 : f32 to vector<8x1xf32>
    %28 = arith.mulf %27, %26 : vector<8x1xf32>
    %29 = vector.broadcast %23 : vector<8x1xf32> to vector<8x128xf32>
    %30 = arith.mulf %29, %17 : vector<8x128xf32>
    %31 = vector.broadcast %28 : vector<8x1xf32> to vector<8x128xf32>
    %32 = arith.mulf %31, %18 : vector<8x128xf32>
    %33 = arith.addf %30, %32 : vector<8x128xf32>
    %cst_10 = arith.constant 1.250000e-01 : f32
    %34 = arith.mulf %10, %cst_10 : f32
    %35 = vector.broadcast %34 : f32 to vector<8x128xf32>
    %36 = arith.addf %33, %35 : vector<8x128xf32>
    %37 = math.log %36 : vector<8x128xf32>
    %c0_11 = arith.constant 0 : index
    %c0_12 = arith.constant 0 : index
    %38 = vector.load %arg5[%c0_11, %c0_12] : memref<8x128xf32, #tpu.memory_space<vmem>>, vector<8x128xf32>
    tpu.vector_store %arg5[%c0_11, %c0_12], %37 {strides = array<i32>} : memref<8x128xf32, #tpu.memory_space<vmem>>, vector<8x128xf32>,
    return
  }
  func.func @transform_0(%arg0: i32) -> i32 {
    %c0_i32 = arith.constant 0 : i32
    %c0_i32_0 = arith.constant 0 : i32
    return %c0_i32 : i32
  }
  func.func @transform_1(%arg0: i32) -> (i32, i32) {
    %c0_i32 = arith.constant 0 : i32
    %c0_i32_0 = arith.constant 0 : i32
    return %arg0, %c0_i32 : i32, i32
  }
  func.func @transform_2(%arg0: i32) -> (i32, i32) {
    %c0_i32 = arith.constant 0 : i32
    %c0_i32_0 = arith.constant 0 : i32
    %c0_i32_1 = arith.constant 0 : i32
    return %c0_i32, %c0_i32_0 : i32, i32
  }
  func.func @transform_3(%arg0: i32) -> (i32, i32) {
    %c0_i32 = arith.constant 0 : i32
    %c0_i32_0 = arith.constant 0 : i32
    %c0_i32_1 = arith.constant 0 : i32
    return %c0_i32, %c0_i32_0 : i32, i32
  }
  func.func @transform_4(%arg0: i32) -> (i32, i32) {
    %c0_i32 = arith.constant 0 : i32
    %c0_i32_0 = arith.constant 0 : i32
    return %arg0, %c0_i32 : i32, i32
  }
}

</mosaic_0001>

<llo_original>
// kernel: tpu_custom_call.1
$region0: #{tpu_custom_call.1}
  #allocation0 [shape = 'u32[]', space=smem, size = 0x4, offset = 0x4, fixed_abs, tag = 'smem constant byte address 0x4 - core index']
  #allocation1 [shape = 'u32[144,128]{1,0:T(1,128)}', space=vmem, size = 0x12000, scoped, tag = 'internal scratch']
  %s0 = inlined_call_operand.hbm [shape: f32[4], index: 0, kind: input, shape index: {}]
  %s1 = inlined_call_operand.hbm [shape: bf16[16,32], index: 1, kind: input, shape index: {}]
  %s2 = inlined_call_operand.hbm [shape: bf16[32,128], index: 2, kind: input, shape index: {}]
  %s3 = inlined_call_operand.vmem [shape: f32[1,128], index: 3, kind: input, shape index: {}]
  %s4 = inlined_call_operand.hbm [shape: f32[16,128], index: 4, kind: output, shape index: {}]
  %s5 = sld [smem:[#allocation0]]
  $region61: #{tpu_custom_call.1} parent=0
    _
  %s7 = ssub.s32 1, %s5
  %s8 = scalar_select 0, %s7, %s5
  $region1: #{tpu_custom_call.1} parent=0
    #allocation2 [shape = 'u8[512]{0}', space=smem, size = 0x200, scoped, tag = 'input window, operand 0, single buffered']
    #allocation3 [shape = 's32[2]{0}', space=sflag, size = 0x8, scoped, tag = 'scoped memory for tpu_custom_call.1']
    #allocation4 [shape = 's32[2]{0}', space=sflag, size = 0x8, scoped, tag = 'scoped memory for tpu_custom_call.1']
    #allocation5 [shape = 's32[2]{0}', space=sflag, size = 0x8, scoped, tag = 'scoped memory for tpu_custom_call.1']
    #allocation6 [shape = 'u8[4096]{0}', space=vmem, size = 0x1000, scoped, tag = 'input window, operand 1']
    #allocation7 [shape = 'u8[8192]{0}', space=vmem, size = 0x2000, scoped, tag = 'input window, operand 2, single buffered']
    #allocation8 [shape = 's32[1]{0}', space=sflag, size = 0x4, scoped, tag = 'scoped memory for tpu_custom_call.1']
    #allocation9 [shape = 'u8[8192]{0}', space=vmem, size = 0x2000, scoped, tag = 'output window, operand 0']
    %9 = vsyncpa [#allocation5], 0
    %10 = vsyncpa [#allocation3], 0
    %s11 = scalar_lea.sflag [#allocation3], 1
    %12 = vsyncpa %s11, 0
    %13 = vsyncpa [#allocation8], 0
    %14 = vsyncpa [#allocation4], 0
    %s15 = scalar_lea.sflag [#allocation4], 1
    %16 = vsyncpa %s15, 0
    loop: start=0, step=1, limit=4
    $region2: #{tpu_custom_call.1} parent=1 // loop_pre_header
      _
    $region3: #{tpu_custom_call.1} parent=1 // loop_header
      %s18 = sphi 0, %s22
      %p19 = scmp.ge.s32.totalorder %s18, 4
      %s26 = sphi 0, %s26
      %s28 = sphi 0, %s26
      %s29 = sphi 0, %s28
      %s43 = sphi 0, %s29
      %s49 = sphi 0, %s51
      %s52 = sphi 0, %s49
      %s53 = sphi 0, %s52
      %s69 = sphi 0, %s53
      %s73 = sphi 0, %s73
      %s75 = sphi 0, %s73
      %s76 = sphi 0, %s75
      %s90 = sphi 0, %s76
      %s94 = sphi 0, %s94
      %s96 = sphi 0, %s94
      %s97 = sphi 0, %s96
      %s111 = sphi 0, %s97
      %s117 = sphi 0, %s119
      %s120 = sphi 0, %s117
      %s121 = sphi 0, %s120
      %s137 = sphi 0, %s121
    $region4: #{tpu_custom_call.1} parent=1 // loop_header_branch
      %21 = sbr.rel (%p19) target = $region8
    $region5: #{tpu_custom_call.1} parent=1 // loop_body
      %s23 = ssub.s32 %s18, 1
      %s24 = ssub.s32 %s18, 2
      %s25 = sadd.s32 %s18, 1
      %s27 = sadd.s32 %s26, 1
      %p30 = scmp.eq.s32.totalorder %s18, 1
      %p31 = scmp.ne.s32.totalorder %s26, %s28
      %p32 = scmp.eq.s32.totalorder %s18, 0
      %p33 = por %p31, %p32
      %p34 = scmp.ne.s32.totalorder %s26, %s28
      %p35 = scmp.eq.s32.totalorder %s23, 1
      %p36 = por %p34, %p35
      %p37 = scmp.ne.s32.totalorder %s28, %s29
      %p38 = scmp.eq.s32.totalorder %s23, 0
      %p39 = por %p37, %p38
      %p40 = scmp.ne.s32.totalorder %s28, %s29
      %p41 = scmp.eq.s32.totalorder %s24, 1
      %p42 = por %p40, %p41
      %p44 = scmp.ne.s32.totalorder %s29, %s43
      %p45 = scmp.eq.s32.totalorder %s24, 0
      %p46 = por %p44, %p45
      %s47 = ssub.s32 %s18, %s25
      %p48 = scmp.eq.s32.totalorder %s47, 0
      %s50 = sadd.s32 %s49, 1
      %s51 = scalar_select %p48, %s49, %s50
      %p54 = pneg %p48
      %p55 = scmp.eq.s32.totalorder %s18, 1
      %p56 = por %p54, %p55
      %p57 = scmp.ne.s32.totalorder %s49, %s52
      %p58 = scmp.eq.s32.totalorder %s18, 0
      %p59 = por %p57, %p58
      %p60 = scmp.ne.s32.totalorder %s49, %s52
      %p61 = scmp.eq.s32.totalorder %s23, 1
      %p62 = por %p60, %p61
      %p63 = scmp.ne.s32.totalorder %s52, %s53
      %p64 = scmp.eq.s32.totalorder %s23, 0
      %p65 = por %p63, %p64
      %p66 = scmp.ne.s32.totalorder %s52, %s53
      %p67 = scmp.eq.s32.totalorder %s24, 1
      %p68 = por %p66, %p67
      %p70 = scmp.ne.s32.totalorder %s53, %s69
      %p71 = scmp.eq.s32.totalorder %s24, 0
      %p72 = por %p70, %p71
      %s74 = sadd.s32 %s73, 1
      %p77 = scmp.eq.s32.totalorder %s18, 1
      %p78 = scmp.ne.s32.totalorder %s73, %s75
      %p79 = scmp.eq.s32.totalorder %s18, 0
      %p80 = por %p78, %p79
      %p81 = scmp.ne.s32.totalorder %s73, %s75
      %p82 = scmp.eq.s32.totalorder %s23, 1
      %p83 = por %p81, %p82
      %p84 = scmp.ne.s32.totalorder %s75, %s76
      %p85 = scmp.eq.s32.totalorder %s23, 0
      %p86 = por %p84, %p85
      %p87 = scmp.ne.s32.totalorder %s75, %s76
      %p88 = scmp.eq.s32.totalorder %s24, 1
      %p89 = por %p87, %p88
      %p91 = scmp.ne.s32.totalorder %s76, %s90
      %p92 = scmp.eq.s32.totalorder %s24, 0
      %p93 = por %p91, %p92
      %s95 = sadd.s32 %s94, 1
      %p98 = scmp.eq.s32.totalorder %s18, 1
      %p99 = scmp.ne.s32.totalorder %s94, %s96
      %p100 = scmp.eq.s32.totalorder %s18, 0
      %p101 = por %p99, %p100
      %p102 = scmp.ne.s32.totalorder %s94, %s96
      %p103 = scmp.eq.s32.totalorder %s23, 1
      %p104 = por %p102, %p103
      %p105 = scmp.ne.s32.totalorder %s96, %s97
      %p106 = scmp.eq.s32.totalorder %s23, 0
      %p107 = por %p105, %p106
      %p108 = scmp.ne.s32.totalorder %s96, %s97
      %p109 = scmp.eq.s32.totalorder %s24, 1
      %p110 = por %p108, %p109
      %p112 = scmp.ne.s32.totalorder %s97, %s111
      %p113 = scmp.eq.s32.totalorder %s24, 0
      %p114 = por %p112, %p113
      %s115 = ssub.s32 %s18, %s25
      %p116 = scmp.eq.s32.totalorder %s115, 0
      %s118 = sadd.s32 %s117, 1
      %s119 = scalar_select %p116, %s117, %s118
      %p122 = pneg %p116
      %p123 = scmp.eq.s32.totalorder %s18, 1
      %p124 = por %p122, %p123
      %p125 = scmp.ne.s32.totalorder %s117, %s120
      %p126 = scmp.eq.s32.totalorder %s18, 0
      %p127 = por %p125, %p126
      %p128 = scmp.ne.s32.totalorder %s117, %s120
      %p129 = scmp.eq.s32.totalorder %s23, 1
      %p130 = por %p128, %p129
      %p131 = scmp.ne.s32.totalorder %s120, %s121
      %p132 = scmp.eq.s32.totalorder %s23, 0
      %p133 = por %p131, %p132
      %p134 = scmp.ne.s32.totalorder %s120, %s121
      %p135 = scmp.eq.s32.totalorder %s24, 1
      %p136 = por %p134, %p135
      %p138 = scmp.ne.s32.totalorder %s121, %s137
      %p139 = scmp.eq.s32.totalorder %s24, 0
      %p140 = por %p138, %p139
      %p141 = scmp.le.s32.totalorder 1, %s18
      %p142 = scmp.lt.s32.totalorder %s18, 3
      %p143 = pnand %p141, %p142
      %p144 = pneg %p143
      // Predicated region
      $region9: #{tpu_custom_call.1} parent=5 // pred_check
        _
      $region10: #{tpu_custom_call.1} parent=5 // pred_check_branch
        %146 = sbr.rel (%p143) target = $region12
      $region11: #{tpu_custom_call.1} parent=5 // pred_region
        %s147 = ssub.s32 %s18, 1
        // Predicated region
        $region13: #{tpu_custom_call.1} parent=11 // pred_check
          %p148 = pneg %p39
        $region14: #{tpu_custom_call.1} parent=11 // pred_check_branch
          %150 = sbr.rel (%p148) target = $region16
        $region15: #{tpu_custom_call.1} parent=11 // pred_region
          %s152 = ssub.s32 16, 16
          %153 = vsyncadd [#allocation5], %s152
          %156 = dma.hbm_to_smem %s0, 16, [#allocation2], [#allocation5]
        $region16: #{tpu_custom_call.1} parent=11 // pred_fallthru
          _
        // Predicated region
        $region17: #{tpu_custom_call.1} parent=11 // pred_check
          %p157 = pneg %p86
        $region18: #{tpu_custom_call.1} parent=11 // pred_check_branch
          %159 = sbr.rel (%p157) target = $region20
        $region19: #{tpu_custom_call.1} parent=11 // pred_region
          %s161 = ssub.s32 256, 256
          %162 = vsyncadd [#allocation8], %s161
          %s163 = sshll.u32 [#allocation7], 4
          %s164 = int_to_ptr.vmem [resolvable:$true] %s163
          %169 = dma.hbm_to_vmem [thread:$0]  %s2, 256, %s164, [#allocation8], 64, 64, 4
        $region20: #{tpu_custom_call.1} parent=11 // pred_fallthru
          _
        // Predicated region
        $region21: #{tpu_custom_call.1} parent=11 // pred_check
          %p170 = pneg %p107
        $region22: #{tpu_custom_call.1} parent=11 // pred_check_branch
          %172 = sbr.rel (%p170) target = $region24
        $region23: #{tpu_custom_call.1} parent=11 // pred_region
          _
        $region24: #{tpu_custom_call.1} parent=11 // pred_fallthru
          _
      $region12: #{tpu_custom_call.1} parent=5 // pred_fallthru
        _
      %p173 = scmp.lt.s32.totalorder %s18, 2
      // Predicated region
      $region25: #{tpu_custom_call.1} parent=5 // pred_check
        %p174 = pneg %p173
      $region26: #{tpu_custom_call.1} parent=5 // pred_check_branch
        %176 = sbr.rel (%p174) target = $region28
      $region27: #{tpu_custom_call.1} parent=5 // pred_region
        // Predicated region
        $region29: #{tpu_custom_call.1} parent=27 // pred_check
          %p177 = pneg %p59
        $region30: #{tpu_custom_call.1} parent=27 // pred_check_branch
          %179 = sbr.rel (%p177) target = $region32
        $region31: #{tpu_custom_call.1} parent=27 // pred_region
          %s180 = sand.u32 %s49, 1
          %s181 = scalar_lea.sflag [#allocation3], %s180
          %s182 = sand.u32 %s49, 1
          %s183 = smul.addr %s182, 4
          %s184 = scalar_lea.vmem [#allocation6], %s183
          %s186 = ssub.s32 64, 64
          %187 = vsyncadd %s181, %s186
          %s188 = smul.addr %s18, 64
          %s189 = scalar_lea.hbm %s1, %s188
          %s191 = sshll.u32 %s184, 4
          %s192 = int_to_ptr.vmem [resolvable:$true] %s191
          %194 = dma.hbm_to_vmem [thread:$0]  %s189, 64, %s192, %s181
        $region32: #{tpu_custom_call.1} parent=27 // pred_fallthru
          _
      $region28: #{tpu_custom_call.1} parent=5 // pred_fallthru
        _
      %p195 = scmp.le.s32.totalorder 1, %s18
      %p196 = scmp.lt.s32.totalorder %s18, 3
      %p197 = pnand %p195, %p196
      %p198 = pneg %p197
      // Predicated region
      $region33: #{tpu_custom_call.1} parent=5 // pred_check
        _
      $region34: #{tpu_custom_call.1} parent=5 // pred_check_branch
        %200 = sbr.rel (%p197) target = $region36
      $region35: #{tpu_custom_call.1} parent=5 // pred_region
        %s201 = ssub.s32 %s18, 1
        // Predicated region
        $region37: #{tpu_custom_call.1} parent=35 // pred_check
          %p202 = pneg %p39
        $region38: #{tpu_custom_call.1} parent=35 // pred_check_branch
          %204 = sbr.rel (%p202) target = $region40
        $region39: #{tpu_custom_call.1} parent=35 // pred_region
          %205 = dma.done [#allocation5], 16
        $region40: #{tpu_custom_call.1} parent=35 // pred_fallthru
          _
        %s206 = sand.u32 %s52, 1
        %s207 = scalar_lea.sflag [#allocation3], %s206
        %s208 = sand.u32 %s52, 1
        %s209 = smul.addr %s208, 4
        %s210 = scalar_lea.vmem [#allocation6], %s209
        // Predicated region
        $region41: #{tpu_custom_call.1} parent=35 // pred_check
          %p211 = pneg %p65
        $region42: #{tpu_custom_call.1} parent=35 // pred_check_branch
          %213 = sbr.rel (%p211) target = $region44
        $region43: #{tpu_custom_call.1} parent=35 // pred_region
          %214 = dma.done %s207, 64
        $region44: #{tpu_custom_call.1} parent=35 // pred_fallthru
          _
        // Predicated region
        $region45: #{tpu_custom_call.1} parent=35 // pred_check
          %p215 = pneg %p86
        $region46: #{tpu_custom_call.1} parent=35 // pred_check_branch
          %217 = sbr.rel (%p215) target = $region48
        $region47: #{tpu_custom_call.1} parent=35 // pred_region
          %218 = dma.done [#allocation8], 256
        $region48: #{tpu_custom_call.1} parent=35 // pred_fallthru
          _
        %219 = sfence
        %p220 = pneg %p39
        %p221 = pneg %p36
        %s222 = sand.u32 %s52, 1
        %s223 = scalar_lea.sflag [#allocation3], %s222
        %s224 = sand.u32 %s52, 1
        %s225 = smul.addr %s224, 4
        %s226 = scalar_lea.vmem [#allocation6], %s225
        %p227 = pneg %p65
        %p228 = pneg %p62
        %p229 = pneg %p86
        %p230 = pneg %p83
        %p231 = pneg %p107
        %p232 = pneg %p104
        %p233 = pneg %p133
        %p234 = pneg %p130
        %s235 = sand.u32 %s120, 1
        %s236 = scalar_lea.sflag [#allocation4], %s235
        %s237 = sand.u32 %s120, 1
        %s238 = smul.addr %s237, 8
        %s239 = scalar_lea.vmem [#allocation9], %s238
        %v241 = vld [vmem:[%s210] sm:$0xf]
        %v242 = vld [vmem:[#allocation7] sm:$0xf]
        %v243 = vld [vmem:[#allocation7 + $0x4] sm:$0xf]
        %v244 = vld [vmem:[#allocation7 + $0x8] sm:$0xf]
        %v245 = vld [vmem:[#allocation7 + $0xc] sm:$0xf]
        %v246 = vld [vmem:[%s3] sm:$0x1]
        %v248 = vlaneseq
        %v249 = vshrl.u32 %v248, 7
        %v250 = vsub.s32 0, %v249
        %v251 = vrot.slane %v246, %v250
        %v257 = vunpack.c.l.b16 %v242
        %v258 = vunpack.c.l.b16 %v243
        %v259 = vunpack.c.l.b16 %v244
        %v260 = vunpack.c.l.b16 %v245
        %v261 = vpack.c.b16 %v258, %v257
        %v262 = vpack.c.b16 %v260, %v259
        %vm265 = vcmask 261120
        %v267 = vsel %vm265, %v241, 0
        %269 = vmatprep.subr.bf16.mxu0 0
        %270 = vmatpush1.bf16.msra.mxu0 %v261
        %271 = vmatprep.subr.bf16.mxu0 0
        %272 = vmatpush1.bf16.msra.mxu0 %v262
        %273 = vmatprep.subr.bf16.mxu0 0
        %274 = vmatpush1.bf16.msra.mxu0 0
        %275 = vmatprep.subr.bf16.mxu0 0
        %276 = vmatpush1.bf16.msra.mxu0 0
        %277 = vmatprep.subr.bf16.mxu0 0
        %278 = vmatpush1.bf16.msra.mxu0 0
        %279 = vmatprep.subr.bf16.mxu0 0
        %280 = vmatpush1.bf16.msra.mxu0 0
        %281 = vmatprep.subr.bf16.mxu0 0
        %282 = vmatpush1.bf16.msra.mxu0 0
        %283 = vmatprep.subr.bf16.mxu0 0
        %284 = vmatpush1.bf16.msra.mxu0 0
        %285 = vmatprep.subr.bf16.mxu0 0
        %286 = vmatpush1.bf16.msra.mxu0 0
        %287 = vmatprep.subr.bf16.mxu0 0
        %288 = vmatpush1.bf16.msra.mxu0 0
        %289 = vmatprep.subr.bf16.mxu0 0
        %290 = vmatpush1.bf16.msra.mxu0 0
        %291 = vmatprep.subr.bf16.mxu0 0
        %292 = vmatpush1.bf16.msra.mxu0 0
        %293 = vmatprep.subr.bf16.mxu0 0
        %294 = vmatpush1.bf16.msra.mxu0 0
        %295 = vmatprep.subr.bf16.mxu0 0
        %296 = vmatpush1.bf16.msra.mxu0 0
        %297 = vmatprep.subr.bf16.mxu0 0
        %298 = vmatpush1.bf16.msra.mxu0 0
        %299 = vmatprep.subr.bf16.mxu0 0
        %300 = vmatpush1.bf16.msra.mxu0 0
        %301 = vmatprep.mubr.bf16.mxu0 0
        %302 = vmatmul.mubr.bf16.gmra.mrb[0].mxu0 %v267
        %v303 = vpop.f32.mrb[0].mxu0
        %v304 = vadd.f32 %v251, %v303
        %v305 = vpop.f32.mrb[0].mxu0
        %v306 = vpop.f32.mrb[0].mxu0
        %v307 = vpop.f32.mrb[0].mxu0
        %308 = vdwg.mxu0
        %s309 = sld [smem:[#allocation2]]
        %v310 = vstv %s309
        %v311 = vrcp.pop %v310
        %s312 = vtos %v311
        %s313 = sld [smem:[#allocation2 + $0x1]]
        %s314 = sld [smem:[#allocation2 + $0x2]]
        %s315 = sld [smem:[#allocation2 + $0x3]]
        %316 = vmax.xlane.f32.xlu0 %v304
        %v317 = vpop.xlane.xlu0 %316
        %v318 = vsub.f32 %v304, %v317
        %v319 = vstv %s312
        %v320 = vmul.f32 %v318, %v319
        %v321 = vmul.f32 %v320, 1.442695
        %v322 = vpow.pop %v321
        %v323 = vmul.f32 %v318, 1.442695
        %v324 = vpow.pop %v323
        %325 = vadd.xlane.f32.xlu0 %v322
        %v326 = vpop.xlane.xlu0 %325
        %v327 = vrcp.pop %v326
        %v328 = vstv %s313
        %v329 = vmul.f32 %v328, %v327
        %330 = vadd.xlane.f32.xlu0 %v324
        %v331 = vpop.xlane.xlu0 %330
        %v332 = vrcp.pop %v331
        %v333 = vstv %s314
        %v334 = vmul.f32 %v333, %v332
        %v335 = vmul.f32 %v329, %v322
        %v336 = vmul.f32 %v334, %v324
        %v337 = vadd.f32 %v335, %v336
        %s338 = smul.f32 %s315, 0.125
        %v339 = vstv %s338
        %v340 = vadd.f32 %v337, %v339
        %v341 = vlog2.pop %v340
        %v342 = vmul.f32 %v341, 0.6931472
        %343 = vst [vmem:[%s239] sm:$0xff] %v342
        %s344 = sand.u32 %s120, 1
        %s345 = scalar_lea.sflag [#allocation4], %s344
        %s346 = sand.u32 %s120, 1
        %s347 = smul.addr %s346, 8
        %s348 = scalar_lea.vmem [#allocation9], %s347
        // Predicated region
        $region49: #{tpu_custom_call.1} parent=35 // pred_check
          %p349 = pneg %p130
        $region50: #{tpu_custom_call.1} parent=35 // pred_check_branch
          %351 = sbr.rel (%p349) target = $region52
        $region51: #{tpu_custom_call.1} parent=35 // pred_region
          %s353 = ssub.s32 128, 128
          %354 = vsyncadd %s345, %s353
          %s355 = smul.addr %s23, 128
          %s356 = scalar_lea.hbm %s4, %s355
          %s358 = sshll.u32 %s348, 4
          %s359 = int_to_ptr.vmem [resolvable:$true] %s358
          %361 = dma.vmem_to_hbm [thread:$0]  %s359, 128, %s356, %s345
        $region52: #{tpu_custom_call.1} parent=35 // pred_fallthru
          _
      $region36: #{tpu_custom_call.1} parent=5 // pred_fallthru
        _
      %p362 = scmp.le.s32.totalorder 2, %s18
      // Predicated region
      $region53: #{tpu_custom_call.1} parent=5 // pred_check
        %p363 = pneg %p362
      $region54: #{tpu_custom_call.1} parent=5 // pred_check_branch
        %365 = sbr.rel (%p363) target = $region56
      $region55: #{tpu_custom_call.1} parent=5 // pred_region
        %s366 = ssub.s32 %s18, 2
        // Predicated region
        $region57: #{tpu_custom_call.1} parent=55 // pred_check
          %p367 = pneg %p136
        $region58: #{tpu_custom_call.1} parent=55 // pred_check_branch
          %369 = sbr.rel (%p367) target = $region60
        $region59: #{tpu_custom_call.1} parent=55 // pred_region
          %s370 = sand.u32 %s121, 1
          %s371 = scalar_lea.sflag [#allocation4], %s370
          %s372 = sand.u32 %s121, 1
          %s373 = smul.addr %s372, 8
          %s374 = scalar_lea.vmem [#allocation9], %s373
          %375 = dma.done %s371, 128
        $region60: #{tpu_custom_call.1} parent=55 // pred_fallthru
          _
      $region56: #{tpu_custom_call.1} parent=5 // pred_fallthru
        _
    $region6: #{tpu_custom_call.1} parent=1 // loop_footer
      %s22 = sadd.s32 1, %s18
    $region7: #{tpu_custom_call.1} parent=1 // loop_footer_branch
      %17 = sbr.rel target = $region3
    $region8: #{tpu_custom_call.1} parent=1 // loop_exit
      _
    %376 = vsyncpa [#allocation3], 1
    %s377 = scalar_lea.sflag [#allocation3], 1
    %378 = vsyncpa %s377, 1
    %379 = vsyncpa [#allocation8], 1
    %380 = vsyncpa [#allocation4], 1
    %s381 = scalar_lea.sflag [#allocation4], 1
    %382 = vsyncpa %s381, 1
    %383 = vsyncpa [#allocation5], 1
    %s384 = scalar_lea.sflag [#allocation5], 1
    %385 = vsyncpa %s384, 1

</llo_original>
